<compile_context>
chip_gen: v7x
topology: tpu7x:2x2x1
jax: 0.10.0
libtpu: 0.0.40
codegen_flags: <defaults>
</compile_context>

<pallas_src>
import jax
import jax.numpy as jnp
from jax.experimental import pallas as pl
from jax.experimental.pallas import tpu as pltpu


def _bias_add_kernel(x_ref, bias_ref, out_ref):
    # x_ref/out_ref: (1, tt, D); bias_ref: (1, 1, D) -> broadcast over the seq tile.
    out_ref[...] = x_ref[...] + bias_ref[...]


def _choose_seq_tile(T, D, B, itemsize, vmem_budget_bytes):
    """Pick the sequence-tile length tt for the (1, tt, D) streaming blocks."""
    # Sub-32-bit dtypes pack rows along sublanes: align tt accordingly.
    sublane = {4: 8, 2: 16, 1: 32}.get(itemsize, 8)
    # Streaming working set = x-in + out blocks, each double-buffered.
    tt_budget = max(sublane, vmem_budget_bytes // (4 * D * itemsize))
    # Give the megacore scheduler ~8+ grid steps when possible (v7x has 2 TCs).
    min_t_steps = max(1, -(-8 // B))
    tt_parallel = max(sublane, -(-T // min_t_steps))
    tt = min(tt_budget, tt_parallel)
    tt = max(sublane, (tt // sublane) * sublane)
    tt = min(tt, T)
    # Prefer a tt that divides T (no ragged-tail masked stores) if one exists
    # without shrinking the tile by more than 2x.
    if T % tt != 0:
        cand = (tt // sublane) * sublane
        while cand >= max(sublane, tt // 2):
            if T % cand == 0:
                tt = cand
                break
            cand -= sublane
    return tt


def bias_conditioner(x, embedding, weight, bias, *, vmem_budget_bytes=16 * 1024 * 1024):
    """out = x + (embedding @ weight + bias)[:, None, :]

    x:         (B, T, D)
    embedding: (B, E)
    weight:    (E, D)   (== torch Linear weight.T)
    bias:      (D,)
    """
    B, T, D = x.shape
    Be, E = embedding.shape
    assert Be == B and weight.shape == (E, D) and bias.shape == (D,)

    # Projection hoisted to a tiny XLA GEMM (f32 accumulation); cast to x dtype so
    # the kernel's broadcast-add stays in the streaming dtype.
    bias_vec = (
        jnp.dot(embedding, weight, preferred_element_type=jnp.float32)
        + bias.astype(jnp.float32)
    ).astype(x.dtype).reshape(B, 1, D)

    itemsize = jnp.dtype(x.dtype).itemsize
    tt = _choose_seq_tile(T, D, B, itemsize, vmem_budget_bytes)
    grid = (B, pl.cdiv(T, tt))

    # Scoped VMEM: x/out double buffers + the tiny bias row, with 2x headroom,
    # kept well under v7x's 64 MiB physical VMEM.
    needed = 4 * tt * D * itemsize + 2 * D * itemsize
    vmem_limit = int(min(max(2 * needed, 16 * 1024 * 1024), 48 * 1024 * 1024))

    return pl.pallas_call(
        _bias_add_kernel,
        out_shape=jax.ShapeDtypeStruct((B, T, D), x.dtype),
        grid=grid,
        in_specs=[
            pl.BlockSpec((1, tt, D), lambda b, t: (b, t, 0)),   # x: streams per tile
            pl.BlockSpec((1, 1, D), lambda b, t: (b, 0, 0)),    # per-batch bias row
        ],
        out_specs=pl.BlockSpec((1, tt, D), lambda b, t: (b, t, 0)),
        input_output_aliases={0: 0},                            # donate x's HBM buffer
        compiler_params=pltpu.CompilerParams(
            dimension_semantics=("parallel", "parallel"),
            vmem_limit_bytes=vmem_limit,
        ),
        cost_estimate=pl.CostEstimate(
            flops=B * T * D,
            transcendentals=0,
            bytes_accessed=(2 * B * T * D + B * D) * itemsize,
        ),
    )(x, bias_vec)


def _init_params(key, embedding_dim, input_dim):
    # Deterministic init mimicking nn.Linear default (uniform +/- 1/sqrt(fan_in)).
    k_w, k_b = jax.random.split(key)
    bound = 1.0 / jnp.sqrt(jnp.float32(embedding_dim))
    weight = jax.random.uniform(
        k_w, (embedding_dim, input_dim), jnp.float32, -bound, bound
    )  # stored as torch_weight.T
    bias = jax.random.uniform(k_b, (input_dim,), jnp.float32, -bound, bound)
    return weight, bias


if __name__ == "__main__":
    key = jax.random.PRNGKey(0)
    k_x, k_e, k_p = jax.random.split(key, 3)

    batch = 2
    seq = 8
    input_dim = 4       # D (a multiple of 128 in production; tiny here for the demo)
    embedding_dim = 32  # E

    x = jax.random.normal(k_x, (batch, seq, input_dim), jnp.float32)
    embedding = jax.random.normal(k_e, (batch, embedding_dim), jnp.float32)
    weight, bias = _init_params(k_p, embedding_dim, input_dim)

    # Reference (same math as the PyTorch module), computed BEFORE the kernel call
    # since the kernel donates x's buffer into its output.
    expected = x + (embedding @ weight + bias)[:, None, :]

    out = jax.block_until_ready(bias_conditioner(x, embedding, weight, bias))

    assert out.shape == (batch, seq, input_dim)
    assert jnp.allclose(out, expected, atol=1e-5, rtol=1e-5)
    print("KERNEL_OK")
</pallas_src>

<mosaic_0001>
module attributes {stable_mosaic.version = 11 : i64} {
  func.func @_bias_add_kernel(%arg0: i32, %arg1: i32, %arg2: memref<1x8x4xf32, #tpu.memory_space<vmem>>, %arg3: memref<1x1x4xf32, #tpu.memory_space<vmem>>, %arg4: memref<1x8x4xf32, #tpu.memory_space<vmem>>) attributes {dimension_semantics = [#tpu.dimension_semantics<parallel>, #tpu.dimension_semantics<parallel>], iteration_bounds = array<i64: 2, 1>, scalar_prefetch = 0 : i64, scratch_operands = 0 : i64, tpu.core_type = #tpu.core_type<tc>, window_params = [{transform_indices = @transform_0, window_bounds = array<i64: 1, 8, 4>}, {transform_indices = @transform_1, window_bounds = array<i64: 1, 1, 4>}, {transform_indices = @transform_2, window_bounds = array<i64: 1, 8, 4>}]} {
    %c0 = arith.constant 0 : index
    %c0_0 = arith.constant 0 : index
    %c0_1 = arith.constant 0 : index
    %0 = vector.load %arg2[%c0, %c0_0, %c0_1] : memref<1x8x4xf32, #tpu.memory_space<vmem>>, vector<1x8x4xf32>
    %c0_2 = arith.constant 0 : index
    %c0_3 = arith.constant 0 : index
    %c0_4 = arith.constant 0 : index
    %1 = vector.load %arg3[%c0_2, %c0_3, %c0_4] : memref<1x1x4xf32, #tpu.memory_space<vmem>>, vector<1x1x4xf32>
    %2 = vector.broadcast %1 : vector<1x1x4xf32> to vector<1x8x4xf32>
    %3 = arith.addf %0, %2 : vector<1x8x4xf32>
    %c0_5 = arith.constant 0 : index
    %c0_6 = arith.constant 0 : index
    %c0_7 = arith.constant 0 : index
    %4 = vector.load %arg4[%c0_5, %c0_6, %c0_7] : memref<1x8x4xf32, #tpu.memory_space<vmem>>, vector<1x8x4xf32>
    tpu.vector_store %arg4[%c0_5, %c0_6, %c0_7], %3 {strides = array<i32>} : memref<1x8x4xf32, #tpu.memory_space<vmem>>, vector<1x8x4xf32>,
    return
  }
  func.func @transform_0(%arg0: i32, %arg1: i32) -> (i32, i32, i32) {
    %c0_i32 = arith.constant 0 : i32
    %c0_i32_0 = arith.constant 0 : i32
    return %arg0, %arg1, %c0_i32 : i32, i32, i32
  }
  func.func @transform_1(%arg0: i32, %arg1: i32) -> (i32, i32, i32) {
    %c0_i32 = arith.constant 0 : i32
    %c0_i32_0 = arith.constant 0 : i32
    %c0_i32_1 = arith.constant 0 : i32
    return %arg0, %c0_i32, %c0_i32_0 : i32, i32, i32
  }
  func.func @transform_2(%arg0: i32, %arg1: i32) -> (i32, i32, i32) {
    %c0_i32 = arith.constant 0 : i32
    %c0_i32_0 = arith.constant 0 : i32
    return %arg0, %arg1, %c0_i32 : i32, i32, i32
  }
}

</mosaic_0001>

<llo_original>
// kernel: tpu_custom_call.1
$region0: #{tpu_custom_call.1}
  #allocation0 [shape = 'u32[]', space=smem, size = 0x4, offset = 0x4, fixed_abs, tag = 'smem constant byte address 0x4 - core index']
  #allocation1 [shape = 'u32[144,128]{1,0:T(1,128)}', space=vmem, size = 0x12000, scoped, tag = 'internal scratch']
  %s0 = inlined_call_operand.vmem [shape: f32[2,8,4], index: 0, kind: input, shape index: {}, may-alias: {0,2}]
  %s1 = inlined_call_operand.vmem [shape: f32[2,1,4], index: 1, kind: input, shape index: {}]
  %s2 = inlined_call_operand.vmem [shape: f32[2,8,4], index: 2, kind: output, shape index: {}, may-alias: {0,2}]
  %s3 = sld [smem:[#allocation0]]
  $region41: #{tpu_custom_call.1} parent=0
    _
  %s5 = ssub.s32 1, %s3
  %s6 = scalar_select 0, %s5, %s3
  loop: start=0, step=1, limit=4
  $region2: #{tpu_custom_call.1} parent=0 // loop_pre_header
    _
  $region3: #{tpu_custom_call.1} parent=0 // loop_header
    %s8 = sphi 0, %s12
    %p9 = scmp.ge.s32.totalorder %s8, 4
    %s15 = sphi 0, %s27
    %s16 = sphi 0, %s23
    %s17 = sphi 0, %s15
    %s18 = sphi 0, %s16
    %s19 = sphi 0, %s17
    %s20 = sphi 0, %s18
    %s32 = sphi 0, %s34
    %s35 = sphi 0, %s32
    %s36 = sphi 0, %s35
    %s52 = sphi 0, %s36
    %s58 = sphi 0, %s60
    %s61 = sphi 0, %s58
    %s62 = sphi 0, %s61
    %s78 = sphi 0, %s62
    %s86 = sphi 0, %s88
    %s89 = sphi 0, %s86
    %s90 = sphi 0, %s89
    %s106 = sphi 0, %s90
  $region4: #{tpu_custom_call.1} parent=0 // loop_header_branch
    %11 = sbr.rel (%p9) target = $region8
  $region5: #{tpu_custom_call.1} parent=0 // loop_body
    %s13 = ssub.s32 %s8, 1
    %s14 = ssub.s32 %s8, 2
    %s21 = sadd.s32 1, %s16
    %p22 = scmp.ge.s32.totalorder %s21, 1
    %s23 = scalar_select %p22, 0, %s21
    %s24 = sadd.s32 1, %s15
    %s25 = scalar_select %p22, %s24, %s15
    %p26 = scmp.ge.s32.totalorder %s25, 2
    %s27 = scalar_select %p26, 0, %s25
    %s28 = ssub.s32 %s15, %s27
    %s29 = ssub.s32 %s16, %s23
    %s30 = sor.u32 %s28, %s29
    %p31 = scmp.eq.s32.totalorder %s30, 0
    %s33 = sadd.s32 %s32, 1
    %s34 = scalar_select %p31, %s32, %s33
    %p37 = pneg %p31
    %p38 = scmp.eq.s32.totalorder %s8, 1
    %p39 = por %p37, %p38
    %p40 = scmp.ne.s32.totalorder %s32, %s35
    %p41 = scmp.eq.s32.totalorder %s8, 0
    %p42 = por %p40, %p41
    %p43 = scmp.ne.s32.totalorder %s32, %s35
    %p44 = scmp.eq.s32.totalorder %s13, 1
    %p45 = por %p43, %p44
    %p46 = scmp.ne.s32.totalorder %s35, %s36
    %p47 = scmp.eq.s32.totalorder %s13, 0
    %p48 = por %p46, %p47
    %p49 = scmp.ne.s32.totalorder %s35, %s36
    %p50 = scmp.eq.s32.totalorder %s14, 1
    %p51 = por %p49, %p50
    %p53 = scmp.ne.s32.totalorder %s36, %s52
    %p54 = scmp.eq.s32.totalorder %s14, 0
    %p55 = por %p53, %p54
    %s56 = ssub.s32 %s15, %s27
    %p57 = scmp.eq.s32.totalorder %s56, 0
    %s59 = sadd.s32 %s58, 1
    %s60 = scalar_select %p57, %s58, %s59
    %p63 = pneg %p57
    %p64 = scmp.eq.s32.totalorder %s8, 1
    %p65 = por %p63, %p64
    %p66 = scmp.ne.s32.totalorder %s58, %s61
    %p67 = scmp.eq.s32.totalorder %s8, 0
    %p68 = por %p66, %p67
    %p69 = scmp.ne.s32.totalorder %s58, %s61
    %p70 = scmp.eq.s32.totalorder %s13, 1
    %p71 = por %p69, %p70
    %p72 = scmp.ne.s32.totalorder %s61, %s62
    %p73 = scmp.eq.s32.totalorder %s13, 0
    %p74 = por %p72, %p73
    %p75 = scmp.ne.s32.totalorder %s61, %s62
    %p76 = scmp.eq.s32.totalorder %s14, 1
    %p77 = por %p75, %p76
    %p79 = scmp.ne.s32.totalorder %s62, %s78
    %p80 = scmp.eq.s32.totalorder %s14, 0
    %p81 = por %p79, %p80
    %s82 = ssub.s32 %s15, %s27
    %s83 = ssub.s32 %s16, %s23
    %s84 = sor.u32 %s82, %s83
    %p85 = scmp.eq.s32.totalorder %s84, 0
    %s87 = sadd.s32 %s86, 1
    %s88 = scalar_select %p85, %s86, %s87
    %p91 = pneg %p85
    %p92 = scmp.eq.s32.totalorder %s8, 1
    %p93 = por %p91, %p92
    %p94 = scmp.ne.s32.totalorder %s86, %s89
    %p95 = scmp.eq.s32.totalorder %s8, 0
    %p96 = por %p94, %p95
    %p97 = scmp.ne.s32.totalorder %s86, %s89
    %p98 = scmp.eq.s32.totalorder %s13, 1
    %p99 = por %p97, %p98
    %p100 = scmp.ne.s32.totalorder %s89, %s90
    %p101 = scmp.eq.s32.totalorder %s13, 0
    %p102 = por %p100, %p101
    %p103 = scmp.ne.s32.totalorder %s89, %s90
    %p104 = scmp.eq.s32.totalorder %s14, 1
    %p105 = por %p103, %p104
    %p107 = scmp.ne.s32.totalorder %s90, %s106
    %p108 = scmp.eq.s32.totalorder %s14, 0
    %p109 = por %p107, %p108
    %p110 = scmp.le.s32.totalorder 1, %s8
    %p111 = scmp.lt.s32.totalorder %s8, 3
    %p112 = pnand %p110, %p111
    %p113 = pneg %p112
    // Predicated region
    $region9: #{tpu_custom_call.1} parent=5 // pred_check
      _
    $region10: #{tpu_custom_call.1} parent=5 // pred_check_branch
      %115 = sbr.rel (%p112) target = $region12
    $region11: #{tpu_custom_call.1} parent=5 // pred_region
      %s116 = ssub.s32 %s8, 1
    $region12: #{tpu_custom_call.1} parent=5 // pred_fallthru
      _
    %p117 = scmp.lt.s32.totalorder %s8, 2
    // Predicated region
    $region13: #{tpu_custom_call.1} parent=5 // pred_check
      %p118 = pneg %p117
    $region14: #{tpu_custom_call.1} parent=5 // pred_check_branch
      %120 = sbr.rel (%p118) target = $region16
    $region15: #{tpu_custom_call.1} parent=5 // pred_region
      // Predicated region
      $region17: #{tpu_custom_call.1} parent=15 // pred_check
        %p121 = pneg %p42
      $region18: #{tpu_custom_call.1} parent=15 // pred_check_branch
        %123 = sbr.rel (%p121) target = $region20
      $region19: #{tpu_custom_call.1} parent=15 // pred_region
        %p124 = scmp.lt.s32.totalorder %s15, 1
        %s125 = scalar_select %p124, %s15, 1
        %p126 = scmp.lt.s32.totalorder %s16, 0
        %s127 = scalar_select %p126, %s16, 0
        %s128 = sadd.s32 %s127, %s125
        %s129 = smul.addr %s128, 8
        %s130 = scalar_lea.vmem %s0, %s129
      $region20: #{tpu_custom_call.1} parent=15 // pred_fallthru
        _
      // Predicated region
      $region21: #{tpu_custom_call.1} parent=15 // pred_check
        %p131 = pneg %p68
      $region22: #{tpu_custom_call.1} parent=15 // pred_check_branch
        %133 = sbr.rel (%p131) target = $region24
      $region23: #{tpu_custom_call.1} parent=15 // pred_region
        %p134 = scmp.lt.s32.totalorder %s15, 1
        %s135 = scalar_select %p134, %s15, 1
        %s136 = scalar_lea.vmem %s1, %s135
      $region24: #{tpu_custom_call.1} parent=15 // pred_fallthru
        _
    $region16: #{tpu_custom_call.1} parent=5 // pred_fallthru
      _
    %p137 = scmp.le.s32.totalorder 1, %s8
    %p138 = scmp.lt.s32.totalorder %s8, 3
    %p139 = pnand %p137, %p138
    %p140 = pneg %p139
    // Predicated region
    $region25: #{tpu_custom_call.1} parent=5 // pred_check
      _
    $region26: #{tpu_custom_call.1} parent=5 // pred_check_branch
      %142 = sbr.rel (%p139) target = $region28
    $region27: #{tpu_custom_call.1} parent=5 // pred_region
      %s143 = ssub.s32 %s8, 1
      %p144 = scmp.lt.s32.totalorder %s17, 1
      %s145 = scalar_select %p144, %s17, 1
      %p146 = scmp.lt.s32.totalorder %s18, 0
      %s147 = scalar_select %p146, %s18, 0
      %s148 = sadd.s32 %s147, %s145
      %s149 = smul.addr %s148, 8
      %s150 = scalar_lea.vmem %s0, %s149
      %p151 = pneg %p48
      %p152 = pneg %p45
      %p153 = scmp.lt.s32.totalorder %s17, 1
      %s154 = scalar_select %p153, %s17, 1
      %s155 = scalar_lea.vmem %s1, %s154
      %p156 = pneg %p74
      %p157 = pneg %p71
      %p158 = pneg %p102
      %p159 = pneg %p99
      %p160 = scmp.lt.s32.totalorder %s17, 1
      %s161 = scalar_select %p160, %s17, 1
      %p162 = scmp.lt.s32.totalorder %s18, 0
      %s163 = scalar_select %p162, %s18, 0
      %s164 = sadd.s32 %s163, %s161
      %s165 = smul.addr %s164, 8
      %s166 = scalar_lea.vmem %s2, %s165
      %p167 = scmp.lt.s32.totalorder %s17, 1
      %s168 = scalar_select %p167, %s17, 1
      %p169 = scmp.lt.s32.totalorder %s18, 0
      %s170 = scalar_select %p169, %s18, 0
      %s171 = sadd.s32 %s170, %s168
      %s172 = smul.addr %s171, 8
      %s173 = scalar_lea.vmem %s0, %s172
      %p174 = scmp.lt.s32.totalorder %s17, 1
      %s175 = scalar_select %p174, %s17, 1
      %s176 = scalar_lea.vmem %s1, %s175
      %p177 = scmp.lt.s32.totalorder %s17, 1
      %s178 = scalar_select %p177, %s17, 1
      %p179 = scmp.lt.s32.totalorder %s18, 0
      %s180 = scalar_select %p179, %s18, 0
      %s181 = sadd.s32 %s180, %s178
      %s182 = smul.addr %s181, 8
      %s183 = scalar_lea.vmem %s2, %s182
      %v184 = vld [vmem:[%s173] sm:$0xff]
      %v185 = vld [vmem:[%s176] sm:$0x1]
      %v187 = vlaneseq
      %v188 = vshrl.u32 %v187, 7
      %v189 = vsub.s32 0, %v188
      %v190 = vrot.slane %v185, %v189
      %v192 = vadd.f32 %v184, %v190
      %vm193 = vcmask 31744
      %194 = vst.msk [vmem:[%s183] sm:$0xff] %vm193, %v192
      %p195 = scmp.lt.s32.totalorder %s17, 1
      %s196 = scalar_select %p195, %s17, 1
      %p197 = scmp.lt.s32.totalorder %s18, 0
      %s198 = scalar_select %p197, %s18, 0
      %s199 = sadd.s32 %s198, %s196
      %s200 = smul.addr %s199, 8
      %s201 = scalar_lea.vmem %s2, %s200
      // Predicated region
      $region29: #{tpu_custom_call.1} parent=27 // pred_check
        %p202 = pneg %p99
      $region30: #{tpu_custom_call.1} parent=27 // pred_check_branch
        %204 = sbr.rel (%p202) target = $region32
      $region31: #{tpu_custom_call.1} parent=27 // pred_region
        _
      $region32: #{tpu_custom_call.1} parent=27 // pred_fallthru
        _
    $region28: #{tpu_custom_call.1} parent=5 // pred_fallthru
      _
    %p205 = scmp.le.s32.totalorder 2, %s8
    // Predicated region
    $region33: #{tpu_custom_call.1} parent=5 // pred_check
      %p206 = pneg %p205
    $region34: #{tpu_custom_call.1} parent=5 // pred_check_branch
      %208 = sbr.rel (%p206) target = $region36
    $region35: #{tpu_custom_call.1} parent=5 // pred_region
      %s209 = ssub.s32 %s8, 2
      // Predicated region
      $region37: #{tpu_custom_call.1} parent=35 // pred_check
        %p210 = pneg %p105
      $region38: #{tpu_custom_call.1} parent=35 // pred_check_branch
        %212 = sbr.rel (%p210) target = $region40
      $region39: #{tpu_custom_call.1} parent=35 // pred_region
        %p213 = scmp.lt.s32.totalorder %s19, 1
        %s214 = scalar_select %p213, %s19, 1
        %p215 = scmp.lt.s32.totalorder %s20, 0
        %s216 = scalar_select %p215, %s20, 0
        %s217 = sadd.s32 %s216, %s214
        %s218 = smul.addr %s217, 8
        %s219 = scalar_lea.vmem %s2, %s218
      $region40: #{tpu_custom_call.1} parent=35 // pred_fallthru
        _
    $region36: #{tpu_custom_call.1} parent=5 // pred_fallthru
      _
  $region6: #{tpu_custom_call.1} parent=0 // loop_footer
    %s12 = sadd.s32 1, %s8
  $region7: #{tpu_custom_call.1} parent=0 // loop_footer_branch
    %7 = sbr.rel target = $region3
  $region8: #{tpu_custom_call.1} parent=0 // loop_exit
    _

</llo_original>
